<compile_context>
chip_gen: v7x
topology: tpu7x:2x2x1
jax: 0.10.0
libtpu: 0.0.40
codegen_flags: <defaults>
</compile_context>

<pallas_src>
import functools

import jax
import jax.numpy as jnp
from jax import lax
from jax.experimental import pallas as pl
from jax.experimental.pallas import tpu as pltpu

K_FEATURES = 784
N_OUT = 10


def _round_up(v, m):
    return ((v + m - 1) // m) * m


def linear_kernel(x_ref, w_ref, b_ref, o_ref):
    # x_ref: (TM, 784) f32   -- streamed batch tile
    # w_ref: (10, 784)  f32  -- VMEM-resident, PyTorch (out, in) layout
    # b_ref: (1, 10)    f32  -- VMEM-resident
    # o_ref: (TM, 10)   f32
    x = x_ref[...].astype(jnp.bfloat16)   # in-kernel cast (VPU), hidden under x DMA
    w = w_ref[...].astype(jnp.bfloat16)
    acc = lax.dot_general(
        x, w,
        dimension_numbers=(((1,), (1,)), ((), ())),   # contract on K; no w.T needed
        preferred_element_type=jnp.float32)
    o_ref[...] = (acc + b_ref[...]).astype(o_ref.dtype)


@functools.partial(jax.jit, static_argnames=("tm",))
def mnist_logistic_forward(x, w, b, *, tm=1024):
    """x: (B, 784) f32, w: (10, 784) f32 (PyTorch layout), b: (10,) f32 -> (B, 10) f32."""
    B, K = x.shape
    N = w.shape[0]

    # Batch tile: at most `tm` rows, rounded up to 16 (bf16 sublane packing).
    tm_eff = min(tm, _round_up(B, 16))
    if B >= 1024:
        # Ensure >= 2 grid steps so ("parallel",) can use both v7x TensorCores.
        tm_eff = min(tm_eff, _round_up(-(-B // 2), 16))
    grid = pl.cdiv(B, tm_eff)

    bias2d = b.reshape(1, N).astype(jnp.float32)

    out = pl.pallas_call(
        linear_kernel,
        out_shape=jax.ShapeDtypeStruct((B, N), jnp.float32),
        grid_spec=pltpu.PrefetchScalarGridSpec(
            num_scalar_prefetch=0,
            grid=(grid,),
            in_specs=[
                pl.BlockSpec((tm_eff, K), lambda i: (i, 0)),   # stream x tiles (f32)
                pl.BlockSpec((N, K), lambda i: (0, 0)),        # weight VMEM-resident
                pl.BlockSpec((1, N), lambda i: (0, 0)),        # bias VMEM-resident
            ],
            out_specs=pl.BlockSpec((tm_eff, N), lambda i: (i, 0)),  # native (B, 10) output
        ),
        compiler_params=pltpu.CompilerParams(
            dimension_semantics=("parallel",),   # shard batch tiles across TCs (v7x)
        ),
    )(x, w.astype(jnp.float32), bias2d)

    return out


if __name__ == "__main__":
    key = jax.random.PRNGKey(0)
    kx, kw, kb = jax.random.split(key, 3)

    B = 64  # matches `bs = 64` in the tutorial
    x = jax.random.normal(kx, (B, K_FEATURES), dtype=jnp.float32)
    # Deterministic init matching nn.Linear(784, 10) shapes (uniform +/- 1/sqrt(784)).
    bound = 1.0 / (K_FEATURES ** 0.5)
    w = jax.random.uniform(kw, (N_OUT, K_FEATURES), dtype=jnp.float32,
                           minval=-bound, maxval=bound)
    b = jax.random.uniform(kb, (N_OUT,), dtype=jnp.float32,
                           minval=-bound, maxval=bound)

    out = mnist_logistic_forward(x, w, b)
    out = jax.block_until_ready(out)
    assert out.shape == (B, N_OUT)

    # Reference with the same bf16 operand rounding and f32 accumulation.
    ref_bf16 = jnp.dot(x.astype(jnp.bfloat16), w.astype(jnp.bfloat16).T,
                       preferred_element_type=jnp.float32) + b
    assert jnp.allclose(out, ref_bf16, atol=2e-3, rtol=2e-3), \
        float(jnp.max(jnp.abs(out - ref_bf16)))

    # Loose sanity check against full-f32 math (only bf16 operand rounding differs).
    ref_f32 = x @ w.T + b
    assert jnp.allclose(out, ref_f32, atol=5e-2, rtol=5e-2), \
        float(jnp.max(jnp.abs(out - ref_f32)))

    print("KERNEL_OK")
</pallas_src>

<mosaic_0001>
module attributes {stable_mosaic.version = 11 : i64} {
  func.func @linear_kernel(%arg0: i32, %arg1: memref<64x784xf32, #tpu.memory_space<vmem>>, %arg2: memref<10x784xf32, #tpu.memory_space<vmem>>, %arg3: memref<1x10xf32, #tpu.memory_space<vmem>>, %arg4: memref<64x10xf32, #tpu.memory_space<vmem>>) attributes {dimension_semantics = [#tpu.dimension_semantics<parallel>], iteration_bounds = array<i64: 1>, scalar_prefetch = 0 : i64, scratch_operands = 0 : i64, tpu.core_type = #tpu.core_type<tc>, window_params = [{transform_indices = @transform_0, window_bounds = array<i64: 64, 784>}, {pipeline_mode = #tpu.pipeline_mode<synchronous>, transform_indices = @transform_1, window_bounds = array<i64: 10, 784>}, {pipeline_mode = #tpu.pipeline_mode<synchronous>, transform_indices = @transform_2, window_bounds = array<i64: 1, 10>}, {transform_indices = @transform_3, window_bounds = array<i64: 64, 10>}]} {
    %c0 = arith.constant 0 : index
    %c0_0 = arith.constant 0 : index
    %0 = vector.load %arg1[%c0, %c0_0] : memref<64x784xf32, #tpu.memory_space<vmem>>, vector<64x784xf32>
    %1 = arith.truncf %0 : vector<64x784xf32> to vector<64x784xbf16>
    %c0_1 = arith.constant 0 : index
    %c0_2 = arith.constant 0 : index
    %2 = vector.load %arg2[%c0_1, %c0_2] : memref<10x784xf32, #tpu.memory_space<vmem>>, vector<10x784xf32>
    %3 = arith.truncf %2 : vector<10x784xf32> to vector<10x784xbf16>
    %cst = arith.constant dense<0.000000e+00> : vector<64x10xf32>
    %4 = tpu.matmul %1, %3, %cst {dimension_numbers = #tpu.dot_dimension_numbers<[1], [1], [0], [0], [0, 0, 1, 0], [], []>} : vector<64x784xbf16>, vector<10x784xbf16>, vector<64x10xf32> -> vector<64x10xf32>
    %c0_3 = arith.constant 0 : index
    %c0_4 = arith.constant 0 : index
    %5 = vector.load %arg3[%c0_3, %c0_4] : memref<1x10xf32, #tpu.memory_space<vmem>>, vector<1x10xf32>
    %6 = vector.broadcast %5 : vector<1x10xf32> to vector<64x10xf32>
    %7 = arith.addf %4, %6 : vector<64x10xf32>
    %c0_5 = arith.constant 0 : index
    %c0_6 = arith.constant 0 : index
    %8 = vector.load %arg4[%c0_5, %c0_6] : memref<64x10xf32, #tpu.memory_space<vmem>>, vector<64x10xf32>
    tpu.vector_store %arg4[%c0_5, %c0_6], %7 {strides = array<i32>} : memref<64x10xf32, #tpu.memory_space<vmem>>, vector<64x10xf32>,
    return
  }
  func.func @transform_0(%arg0: i32) -> (i32, i32) {
    %c0_i32 = arith.constant 0 : i32
    %c0_i32_0 = arith.constant 0 : i32
    return %arg0, %c0_i32 : i32, i32
  }
  func.func @transform_1(%arg0: i32) -> (i32, i32) {
    %c0_i32 = arith.constant 0 : i32
    %c0_i32_0 = arith.constant 0 : i32
    %c0_i32_1 = arith.constant 0 : i32
    return %c0_i32, %c0_i32_0 : i32, i32
  }
  func.func @transform_2(%arg0: i32) -> (i32, i32) {
    %c0_i32 = arith.constant 0 : i32
    %c0_i32_0 = arith.constant 0 : i32
    %c0_i32_1 = arith.constant 0 : i32
    return %c0_i32, %c0_i32_0 : i32, i32
  }
  func.func @transform_3(%arg0: i32) -> (i32, i32) {
    %c0_i32 = arith.constant 0 : i32
    %c0_i32_0 = arith.constant 0 : i32
    return %arg0, %c0_i32 : i32, i32
  }
}

</mosaic_0001>

<llo_original>
// kernel: mnist_logistic_forward.1
$region0: #{mnist_logistic_forward.1}
  #allocation0 [shape = 'u32[]', space=smem, size = 0x4, offset = 0x4, fixed_abs, tag = 'smem constant byte address 0x4 - core index']
  #allocation1 [shape = 'u32[144,128]{1,0:T(1,128)}', space=vmem, size = 0x12000, scoped, tag = 'internal scratch']
  %s0 = inlined_call_operand.hbm [shape: f32[64,784], index: 0, kind: input, shape index: {}]
  %s1 = inlined_call_operand.hbm [shape: f32[10,784], index: 1, kind: input, shape index: {}]
  %s2 = inlined_call_operand.vmem [shape: f32[1,10], index: 2, kind: input, shape index: {}]
  %s3 = inlined_call_operand.vmem [shape: f32[64,10], index: 3, kind: output, shape index: {}]
  %s4 = sld [smem:[#allocation0]]
  $region30: #{mnist_logistic_forward.1} parent=0
    _
  %s6 = ssub.s32 1, %s4
  %s7 = scalar_select 0, %s6, %s4
  $region1: #{mnist_logistic_forward.1} parent=0
    #allocation2 [shape = 'u8[229376]{0}', space=vmem, size = 0x38000, scoped, tag = 'input window, operand 0, single buffered']
    #allocation3 [shape = 's32[1]{0}', space=sflag, size = 0x4, scoped, tag = 'scoped memory for mnist_logistic_forward.1']
    #allocation4 [shape = 'u8[57344]{0}', space=vmem, size = 0xe000, scoped, tag = 'input window, operand 1, single buffered']
    #allocation5 [shape = 's32[1]{0}', space=sflag, size = 0x4, scoped, tag = 'scoped memory for mnist_logistic_forward.1']
    %8 = vsyncpa [#allocation3], 0
    %9 = vsyncpa [#allocation5], 0
    // Predicated region
    $region2: #{mnist_logistic_forward.1} parent=1 // pred_check
      _
    $region3: #{mnist_logistic_forward.1} parent=1 // pred_check_branch
      %11 = sbr.rel (0) target = $region5
    $region4: #{mnist_logistic_forward.1} parent=1 // pred_region
      %s13 = ssub.s32 7168, 7168
      %14 = vsyncadd [#allocation3], %s13
      %s15 = sshll.u32 [#allocation2], 4
      %s16 = int_to_ptr.vmem [resolvable:$true] %s15
      %21 = dma.hbm_to_vmem [thread:$0]  %s0, 7168, %s16, [#allocation3], 896, 896, 56
    $region5: #{mnist_logistic_forward.1} parent=1 // pred_fallthru
      _
    // Predicated region
    $region6: #{mnist_logistic_forward.1} parent=1 // pred_check
      _
    $region7: #{mnist_logistic_forward.1} parent=1 // pred_check_branch
      %23 = sbr.rel (0) target = $region9
    $region8: #{mnist_logistic_forward.1} parent=1 // pred_region
      %s25 = ssub.s32 1792, 1792
      %26 = vsyncadd [#allocation5], %s25
      %s27 = sshll.u32 [#allocation4], 4
      %s28 = int_to_ptr.vmem [resolvable:$true] %s27
      %33 = dma.hbm_to_vmem [thread:$0]  %s1, 1792, %s28, [#allocation5], 896, 896, 56
    $region9: #{mnist_logistic_forward.1} parent=1 // pred_fallthru
      _
    // Predicated region
    $region10: #{mnist_logistic_forward.1} parent=1 // pred_check
      _
    $region11: #{mnist_logistic_forward.1} parent=1 // pred_check_branch
      %35 = sbr.rel (0) target = $region13
    $region12: #{mnist_logistic_forward.1} parent=1 // pred_region
      _
    $region13: #{mnist_logistic_forward.1} parent=1 // pred_fallthru
      _
    // Predicated region
    $region14: #{mnist_logistic_forward.1} parent=1 // pred_check
      _
    $region15: #{mnist_logistic_forward.1} parent=1 // pred_check_branch
      %37 = sbr.rel (0) target = $region17
    $region16: #{mnist_logistic_forward.1} parent=1 // pred_region
      %38 = dma.done [#allocation3], 7168
    $region17: #{mnist_logistic_forward.1} parent=1 // pred_fallthru
      _
    // Predicated region
    $region18: #{mnist_logistic_forward.1} parent=1 // pred_check
      _
    $region19: #{mnist_logistic_forward.1} parent=1 // pred_check_branch
      %40 = sbr.rel (0) target = $region21
    $region20: #{mnist_logistic_forward.1} parent=1 // pred_region
      %41 = dma.done [#allocation5], 1792
    $region21: #{mnist_logistic_forward.1} parent=1 // pred_fallthru
      _
    %v43 = vld [vmem:[#allocation2] sm:$0xff]
    %v44 = vld [vmem:[#allocation2 + $0x8] sm:$0xff]
    %v45 = vld [vmem:[#allocation2 + $0x10] sm:$0xff]
    %v46 = vld [vmem:[#allocation2 + $0x18] sm:$0xff]
    %v47 = vld [vmem:[#allocation2 + $0x20] sm:$0xff]
    %v48 = vld [vmem:[#allocation2 + $0x28] sm:$0xff]
    %v49 = vld [vmem:[#allocation2 + $0x30] sm:$0xff]
    %v50 = vld [vmem:[#allocation2 + $0x38] sm:$0xff]
    %v51 = vld [vmem:[#allocation2 + $0x40] sm:$0xff]
    %v52 = vld [vmem:[#allocation2 + $0x48] sm:$0xff]
    %v53 = vld [vmem:[#allocation2 + $0x50] sm:$0xff]
    %v54 = vld [vmem:[#allocation2 + $0x58] sm:$0xff]
    %v55 = vld [vmem:[#allocation2 + $0x60] sm:$0xff]
    %v56 = vld [vmem:[#allocation2 + $0x68] sm:$0xff]
    %v57 = vld [vmem:[#allocation2 + $0x70] sm:$0xff]
    %v58 = vld [vmem:[#allocation2 + $0x78] sm:$0xff]
    %v59 = vld [vmem:[#allocation2 + $0x80] sm:$0xff]
    %v60 = vld [vmem:[#allocation2 + $0x88] sm:$0xff]
    %v61 = vld [vmem:[#allocation2 + $0x90] sm:$0xff]
    %v62 = vld [vmem:[#allocation2 + $0x98] sm:$0xff]
    %v63 = vld [vmem:[#allocation2 + $0xa0] sm:$0xff]
    %v64 = vld [vmem:[#allocation2 + $0xa8] sm:$0xff]
    %v65 = vld [vmem:[#allocation2 + $0xb0] sm:$0xff]
    %v66 = vld [vmem:[#allocation2 + $0xb8] sm:$0xff]
    %v67 = vld [vmem:[#allocation2 + $0xc0] sm:$0xff]
    %v68 = vld [vmem:[#allocation2 + $0xc8] sm:$0xff]
    %v69 = vld [vmem:[#allocation2 + $0xd0] sm:$0xff]
    %v70 = vld [vmem:[#allocation2 + $0xd8] sm:$0xff]
    %v71 = vld [vmem:[#allocation2 + $0xe0] sm:$0xff]
    %v72 = vld [vmem:[#allocation2 + $0xe8] sm:$0xff]
    %v73 = vld [vmem:[#allocation2 + $0xf0] sm:$0xff]
    %v74 = vld [vmem:[#allocation2 + $0xf8] sm:$0xff]
    %v75 = vld [vmem:[#allocation2 + $0x100] sm:$0xff]
    %v76 = vld [vmem:[#allocation2 + $0x108] sm:$0xff]
    %v77 = vld [vmem:[#allocation2 + $0x110] sm:$0xff]
    %v78 = vld [vmem:[#allocation2 + $0x118] sm:$0xff]
    %v79 = vld [vmem:[#allocation2 + $0x120] sm:$0xff]
    %v80 = vld [vmem:[#allocation2 + $0x128] sm:$0xff]
    %v81 = vld [vmem:[#allocation2 + $0x130] sm:$0xff]
    %v82 = vld [vmem:[#allocation2 + $0x138] sm:$0xff]
    %v83 = vld [vmem:[#allocation2 + $0x140] sm:$0xff]
    %v84 = vld [vmem:[#allocation2 + $0x148] sm:$0xff]
    %v85 = vld [vmem:[#allocation2 + $0x150] sm:$0xff]
    %v86 = vld [vmem:[#allocation2 + $0x158] sm:$0xff]
    %v87 = vld [vmem:[#allocation2 + $0x160] sm:$0xff]
    %v88 = vld [vmem:[#allocation2 + $0x168] sm:$0xff]
    %v89 = vld [vmem:[#allocation2 + $0x170] sm:$0xff]
    %v90 = vld [vmem:[#allocation2 + $0x178] sm:$0xff]
    %v91 = vld [vmem:[#allocation2 + $0x180] sm:$0xff]
    %v92 = vld [vmem:[#allocation2 + $0x188] sm:$0xff]
    %v93 = vld [vmem:[#allocation2 + $0x190] sm:$0xff]
    %v94 = vld [vmem:[#allocation2 + $0x198] sm:$0xff]
    %v95 = vld [vmem:[#allocation2 + $0x1a0] sm:$0xff]
    %v96 = vld [vmem:[#allocation2 + $0x1a8] sm:$0xff]
    %v97 = vld [vmem:[#allocation2 + $0x1b0] sm:$0xff]
    %v98 = vld [vmem:[#allocation2 + $0x1b8] sm:$0xff]
    %v99 = vpack.c.bf16 %v50, %v43
    %v100 = vpack.c.bf16 %v51, %v44
    %v101 = vpack.c.bf16 %v52, %v45
    %v102 = vpack.c.bf16 %v53, %v46
    %v103 = vpack.c.bf16 %v54, %v47
    %v104 = vpack.c.bf16 %v55, %v48
    %v105 = vpack.c.bf16 %v56, %v49
    %v106 = vpack.c.bf16 %v64, %v57
    %v107 = vpack.c.bf16 %v65, %v58
    %v108 = vpack.c.bf16 %v66, %v59
    %v109 = vpack.c.bf16 %v67, %v60
    %v110 = vpack.c.bf16 %v68, %v61
    %v111 = vpack.c.bf16 %v69, %v62
    %v112 = vpack.c.bf16 %v70, %v63
    %v113 = vpack.c.bf16 %v78, %v71
    %v114 = vpack.c.bf16 %v79, %v72
    %v115 = vpack.c.bf16 %v80, %v73
    %v116 = vpack.c.bf16 %v81, %v74
    %v117 = vpack.c.bf16 %v82, %v75
    %v118 = vpack.c.bf16 %v83, %v76
    %v119 = vpack.c.bf16 %v84, %v77
    %v120 = vpack.c.bf16 %v92, %v85
    %v121 = vpack.c.bf16 %v93, %v86
    %v122 = vpack.c.bf16 %v94, %v87
    %v123 = vpack.c.bf16 %v95, %v88
    %v124 = vpack.c.bf16 %v96, %v89
    %v125 = vpack.c.bf16 %v97, %v90
    %v126 = vpack.c.bf16 %v98, %v91
    %v127 = vld [vmem:[#allocation4] sm:$0xff]
    %v128 = vld [vmem:[#allocation4 + $0x8] sm:$0xff]
    %v129 = vld [vmem:[#allocation4 + $0x10] sm:$0xff]
    %v130 = vld [vmem:[#allocation4 + $0x18] sm:$0xff]
    %v131 = vld [vmem:[#allocation4 + $0x20] sm:$0xff]
    %v132 = vld [vmem:[#allocation4 + $0x28] sm:$0xff]
    %v133 = vld [vmem:[#allocation4 + $0x30] sm:$0xff]
    %v134 = vld [vmem:[#allocation4 + $0x38] sm:$0x3]
    %v135 = vld [vmem:[#allocation4 + $0x40] sm:$0x3]
    %v136 = vld [vmem:[#allocation4 + $0x48] sm:$0x3]
    %v137 = vld [vmem:[#allocation4 + $0x50] sm:$0x3]
    %v138 = vld [vmem:[#allocation4 + $0x58] sm:$0x3]
    %v139 = vld [vmem:[#allocation4 + $0x60] sm:$0x3]
    %v140 = vld [vmem:[#allocation4 + $0x68] sm:$0x3]
    %v141 = vpack.c.bf16 %v134, %v127
    %v142 = vpack.c.bf16 %v135, %v128
    %v143 = vpack.c.bf16 %v136, %v129
    %v144 = vpack.c.bf16 %v137, %v130
    %v145 = vpack.c.bf16 %v138, %v131
    %v146 = vpack.c.bf16 %v139, %v132
    %v147 = vpack.c.bf16 %v140, %v133
    %v148 = vld [vmem:[%s2] sm:$0x1]
    %v150 = vlaneseq
    %v151 = vshrl.u32 %v150, 7
    %v152 = vsub.s32 0, %v151
    %v153 = vrot.slane %v148, %v152
    %vm155 = vcmask 130048
    %v157 = vsel %vm155, %v105, 0
    %v160 = vsel %vm155, %v112, 0
    %v163 = vsel %vm155, %v119, 0
    %v166 = vsel %vm155, %v126, 0
    %v169 = vsel %vm155, %v147, 0
    %171 = vmatprep.subr.bf16.mxu0 %v142
    %172 = vmatpush1.bf16.xpose.msra.mxu0 %v141
    %173 = vmatprep.subr.bf16.mxu0 0
    %174 = vmatpush1.bf16.xpose.msra.mxu0 0
    %175 = vmatprep.subr.bf16.mxu0 0
    %176 = vmatpush1.bf16.xpose.msra.mxu0 0
    %177 = vmatprep.subr.bf16.mxu0 0
    %178 = vmatpush1.bf16.xpose.msra.mxu0 0
    %179 = vmatprep.subr.bf16.mxu0 0
    %180 = vmatpush1.bf16.xpose.msra.mxu0 0
    %181 = vmatprep.subr.bf16.mxu0 0
    %182 = vmatpush1.bf16.xpose.msra.mxu0 0
    %183 = vmatprep.subr.bf16.mxu0 0
    %184 = vmatpush1.bf16.xpose.msra.mxu0 0
    %185 = vmatprep.subr.bf16.mxu0 0
    %186 = vmatpush1.bf16.xpose.msra.mxu0 0
    %187 = vmatprep.subr.bf16.mxu0 0
    %188 = vmatpush1.bf16.xpose.msra.mxu0 0
    %189 = vmatprep.subr.bf16.mxu0 0
    %190 = vmatpush1.bf16.xpose.msra.mxu0 0
    %191 = vmatprep.subr.bf16.mxu0 0
    %192 = vmatpush1.bf16.xpose.msra.mxu0 0
    %193 = vmatprep.subr.bf16.mxu0 0
    %194 = vmatpush1.bf16.xpose.msra.mxu0 0
    %195 = vmatprep.subr.bf16.mxu0 0
    %196 = vmatpush1.bf16.xpose.msra.mxu0 0
    %197 = vmatprep.subr.bf16.mxu0 0
    %198 = vmatpush1.bf16.xpose.msra.mxu0 0
    %199 = vmatprep.subr.bf16.mxu0 0
    %200 = vmatpush1.bf16.xpose.msra.mxu0 0
    %201 = vmatprep.subr.bf16.mxu0 0
    %202 = vmatpush1.bf16.xpose.msra.mxu0 0
    %203 = vmatprep.mubr.bf16.mxu0 %v100
    %204 = vmatmul.mubr.bf16.gmra.mrb[0].mxu0 %v99
    %v205 = vpop.f32.mrb[0].mxu0
    %v206 = vadd.f32 %v153, %v205
    %v207 = vpop.f32.mrb[0].mxu0
    %v208 = vpop.f32.mrb[0].mxu0
    %v209 = vadd.f32 %v153, %v208
    %v210 = vpop.f32.mrb[0].mxu0
    %211 = vmatprep.mubr.bf16.mxu0 %v107
    %212 = vmatmul.mubr.bf16.gmra.mrb[0].mxu0 %v106
    %v213 = vpop.f32.mrb[0].mxu0
    %v214 = vadd.f32 %v153, %v213
    %v215 = vpop.f32.mrb[0].mxu0
    %v216 = vpop.f32.mrb[0].mxu0
    %v217 = vadd.f32 %v153, %v216
    %v218 = vpop.f32.mrb[0].mxu0
    %219 = vmatprep.mubr.bf16.mxu0 %v114
    %220 = vmatmul.mubr.bf16.gmra.mrb[0].mxu0 %v113
    %v221 = vpop.f32.mrb[0].mxu0
    %v222 = vadd.f32 %v153, %v221
    %v223 = vpop.f32.mrb[0].mxu0
    %v224 = vpop.f32.mrb[0].mxu0
    %v225 = vadd.f32 %v153, %v224
    %v226 = vpop.f32.mrb[0].mxu0
    %227 = vmatprep.mubr.bf16.mxu0 %v121
    %228 = vmatmul.mubr.bf16.gmra.mrb[0].mxu0 %v120
    %v229 = vpop.f32.mrb[0].mxu0
    %v230 = vadd.f32 %v153, %v229
    %v231 = vpop.f32.mrb[0].mxu0
    %v232 = vpop.f32.mrb[0].mxu0
    %v233 = vadd.f32 %v153, %v232
    %v234 = vpop.f32.mrb[0].mxu0
    %235 = vdwg.mxu0
    %236 = vmatprep.subr.bf16.mxu0 %v144
    %237 = vmatpush1.bf16.xpose.msra.mxu0 %v143
    %238 = vmatprep.subr.bf16.mxu0 0
    %239 = vmatpush1.bf16.xpose.msra.mxu0 0
    %240 = vmatprep.subr.bf16.mxu0 0
    %241 = vmatpush1.bf16.xpose.msra.mxu0 0
    %242 = vmatprep.subr.bf16.mxu0 0
    %243 = vmatpush1.bf16.xpose.msra.mxu0 0
    %244 = vmatprep.subr.bf16.mxu0 0
    %245 = vmatpush1.bf16.xpose.msra.mxu0 0
    %246 = vmatprep.subr.bf16.mxu0 0
    %247 = vmatpush1.bf16.xpose.msra.mxu0 0
    %248 = vmatprep.subr.bf16.mxu0 0
    %249 = vmatpush1.bf16.xpose.msra.mxu0 0
    %250 = vmatprep.subr.bf16.mxu0 0
    %251 = vmatpush1.bf16.xpose.msra.mxu0 0
    %252 = vmatprep.subr.bf16.mxu0 0
    %253 = vmatpush1.bf16.xpose.msra.mxu0 0
    %254 = vmatprep.subr.bf16.mxu0 0
    %255 = vmatpush1.bf16.xpose.msra.mxu0 0
    %256 = vmatprep.subr.bf16.mxu0 0
    %257 = vmatpush1.bf16.xpose.msra.mxu0 0
    %258 = vmatprep.subr.bf16.mxu0 0
    %259 = vmatpush1.bf16.xpose.msra.mxu0 0
    %260 = vmatprep.subr.bf16.mxu0 0
    %261 = vmatpush1.bf16.xpose.msra.mxu0 0
    %262 = vmatprep.subr.bf16.mxu0 0
    %263 = vmatpush1.bf16.xpose.msra.mxu0 0
    %264 = vmatprep.subr.bf16.mxu0 0
    %265 = vmatpush1.bf16.xpose.msra.mxu0 0
    %266 = vmatprep.subr.bf16.mxu0 0
    %267 = vmatpush1.bf16.xpose.msra.mxu0 0
    %268 = vmatprep.mubr.bf16.mxu0 %v102
    %269 = vmatmul.mubr.bf16.gmra.mrb[0].mxu0 %v101
    %v270 = vpop.f32.mrb[0].mxu0
    %v271 = vadd.f32 %v206, %v270
    %v272 = vpop.f32.mrb[0].mxu0
    %v273 = vpop.f32.mrb[0].mxu0
    %v274 = vadd.f32 %v209, %v273
    %v275 = vpop.f32.mrb[0].mxu0
    %276 = vmatprep.mubr.bf16.mxu0 %v109
    %277 = vmatmul.mubr.bf16.gmra.mrb[0].mxu0 %v108
    %v278 = vpop.f32.mrb[0].mxu0
    %v279 = vadd.f32 %v214, %v278
    %v280 = vpop.f32.mrb[0].mxu0
    %v281 = vpop.f32.mrb[0].mxu0
    %v282 = vadd.f32 %v217, %v281
    %v283 = vpop.f32.mrb[0].mxu0
    %284 = vmatprep.mubr.bf16.mxu0 %v116
    %285 = vmatmul.mubr.bf16.gmra.mrb[0].mxu0 %v115
    %v286 = vpop.f32.mrb[0].mxu0
    %v287 = vadd.f32 %v222, %v286
    %v288 = vpop.f32.mrb[0].mxu0
    %v289 = vpop.f32.mrb[0].mxu0
    %v290 = vadd.f32 %v225, %v289
    %v291 = vpop.f32.mrb[0].mxu0
    %292 = vmatprep.mubr.bf16.mxu0 %v123
    %293 = vmatmul.mubr.bf16.gmra.mrb[0].mxu0 %v122
    %v294 = vpop.f32.mrb[0].mxu0
    %v295 = vadd.f32 %v230, %v294
    %v296 = vpop.f32.mrb[0].mxu0
    %v297 = vpop.f32.mrb[0].mxu0
    %v298 = vadd.f32 %v233, %v297
    %v299 = vpop.f32.mrb[0].mxu0
    %300 = vdwg.mxu0
    %301 = vmatprep.subr.bf16.mxu0 %v146
    %302 = vmatpush1.bf16.xpose.msra.mxu0 %v145
    %303 = vmatprep.subr.bf16.mxu0 0
    %304 = vmatpush1.bf16.xpose.msra.mxu0 0
    %305 = vmatprep.subr.bf16.mxu0 0
    %306 = vmatpush1.bf16.xpose.msra.mxu0 0
    %307 = vmatprep.subr.bf16.mxu0 0
    %308 = vmatpush1.bf16.xpose.msra.mxu0 0
    %309 = vmatprep.subr.bf16.mxu0 0
    %310 = vmatpush1.bf16.xpose.msra.mxu0 0
    %311 = vmatprep.subr.bf16.mxu0 0
    %312 = vmatpush1.bf16.xpose.msra.mxu0 0
    %313 = vmatprep.subr.bf16.mxu0 0
    %314 = vmatpush1.bf16.xpose.msra.mxu0 0
    %315 = vmatprep.subr.bf16.mxu0 0
    %316 = vmatpush1.bf16.xpose.msra.mxu0 0
    %317 = vmatprep.subr.bf16.mxu0 0
    %318 = vmatpush1.bf16.xpose.msra.mxu0 0
    %319 = vmatprep.subr.bf16.mxu0 0
    %320 = vmatpush1.bf16.xpose.msra.mxu0 0
    %321 = vmatprep.subr.bf16.mxu0 0
    %322 = vmatpush1.bf16.xpose.msra.mxu0 0
    %323 = vmatprep.subr.bf16.mxu0 0
    %324 = vmatpush1.bf16.xpose.msra.mxu0 0
    %325 = vmatprep.subr.bf16.mxu0 0
    %326 = vmatpush1.bf16.xpose.msra.mxu0 0
    %327 = vmatprep.subr.bf16.mxu0 0
    %328 = vmatpush1.bf16.xpose.msra.mxu0 0
    %329 = vmatprep.subr.bf16.mxu0 0
    %330 = vmatpush1.bf16.xpose.msra.mxu0 0
    %331 = vmatprep.subr.bf16.mxu0 0
    %332 = vmatpush1.bf16.xpose.msra.mxu0 0
    %333 = vmatprep.mubr.bf16.mxu0 %v104
    %334 = vmatmul.mubr.bf16.gmra.mrb[0].mxu0 %v103
    %v335 = vpop.f32.mrb[0].mxu0
    %v336 = vadd.f32 %v271, %v335
    %v337 = vpop.f32.mrb[0].mxu0
    %v338 = vpop.f32.mrb[0].mxu0
    %v339 = vadd.f32 %v274, %v338
    %v340 = vpop.f32.mrb[0].mxu0
    %341 = vmatprep.mubr.bf16.mxu0 %v111
    %342 = vmatmul.mubr.bf16.gmra.mrb[0].mxu0 %v110
    %v343 = vpop.f32.mrb[0].mxu0
    %v344 = vadd.f32 %v279, %v343
    %v345 = vpop.f32.mrb[0].mxu0
    %v346 = vpop.f32.mrb[0].mxu0
    %v347 = vadd.f32 %v282, %v346
    %v348 = vpop.f32.mrb[0].mxu0
    %349 = vmatprep.mubr.bf16.mxu0 %v118
    %350 = vmatmul.mubr.bf16.gmra.mrb[0].mxu0 %v117
    %v351 = vpop.f32.mrb[0].mxu0
    %v352 = vadd.f32 %v287, %v351
    %v353 = vpop.f32.mrb[0].mxu0
    %v354 = vpop.f32.mrb[0].mxu0
    %v355 = vadd.f32 %v290, %v354
    %v356 = vpop.f32.mrb[0].mxu0
    %357 = vmatprep.mubr.bf16.mxu0 %v125
    %358 = vmatmul.mubr.bf16.gmra.mrb[0].mxu0 %v124
    %v359 = vpop.f32.mrb[0].mxu0
    %v360 = vadd.f32 %v295, %v359
    %v361 = vpop.f32.mrb[0].mxu0
    %v362 = vpop.f32.mrb[0].mxu0
    %v363 = vadd.f32 %v298, %v362
    %v364 = vpop.f32.mrb[0].mxu0
    %365 = vdwg.mxu0
    %366 = vmatprep.subr.bf16.mxu0 0
    %367 = vmatpush1.bf16.xpose.msra.mxu0 %v169
    %368 = vmatprep.subr.bf16.mxu0 0
    %369 = vmatpush1.bf16.xpose.msra.mxu0 0
    %370 = vmatprep.subr.bf16.mxu0 0
    %371 = vmatpush1.bf16.xpose.msra.mxu0 0
    %372 = vmatprep.subr.bf16.mxu0 0
    %373 = vmatpush1.bf16.xpose.msra.mxu0 0
    %374 = vmatprep.subr.bf16.mxu0 0
    %375 = vmatpush1.bf16.xpose.msra.mxu0 0
    %376 = vmatprep.subr.bf16.mxu0 0
    %377 = vmatpush1.bf16.xpose.msra.mxu0 0
    %378 = vmatprep.subr.bf16.mxu0 0
    %379 = vmatpush1.bf16.xpose.msra.mxu0 0
    %380 = vmatprep.subr.bf16.mxu0 0
    %381 = vmatpush1.bf16.xpose.msra.mxu0 0
    %382 = vmatprep.subr.bf16.mxu0 0
    %383 = vmatpush1.bf16.xpose.msra.mxu0 0
    %384 = vmatprep.subr.bf16.mxu0 0
    %385 = vmatpush1.bf16.xpose.msra.mxu0 0
    %386 = vmatprep.subr.bf16.mxu0 0
    %387 = vmatpush1.bf16.xpose.msra.mxu0 0
    %388 = vmatprep.subr.bf16.mxu0 0
    %389 = vmatpush1.bf16.xpose.msra.mxu0 0
    %390 = vmatprep.subr.bf16.mxu0 0
    %391 = vmatpush1.bf16.xpose.msra.mxu0 0
    %392 = vmatprep.subr.bf16.mxu0 0
    %393 = vmatpush1.bf16.xpose.msra.mxu0 0
    %394 = vmatprep.subr.bf16.mxu0 0
    %395 = vmatpush1.bf16.xpose.msra.mxu0 0
    %396 = vmatprep.subr.bf16.mxu0 0
    %397 = vmatpush1.bf16.xpose.msra.mxu0 0
    %398 = vmatprep.mubr.bf16.mxu0 0
    %399 = vmatmul.mubr.bf16.gmra.mrb[0].mxu0 %v157
    %v400 = vpop.f32.mrb[0].mxu0
    %v401 = vadd.f32 %v336, %v400
    %v402 = vpop.f32.mrb[0].mxu0
    %v403 = vpop.f32.mrb[0].mxu0
    %v404 = vadd.f32 %v339, %v403
    %v405 = vpop.f32.mrb[0].mxu0
    %406 = vmatprep.mubr.bf16.mxu0 0
    %407 = vmatmul.mubr.bf16.gmra.mrb[0].mxu0 %v160
    %v408 = vpop.f32.mrb[0].mxu0
    %v409 = vadd.f32 %v344, %v408
    %v410 = vpop.f32.mrb[0].mxu0
    %v411 = vpop.f32.mrb[0].mxu0
    %v412 = vadd.f32 %v347, %v411
    %v413 = vpop.f32.mrb[0].mxu0
    %414 = vmatprep.mubr.bf16.mxu0 0
    %415 = vmatmul.mubr.bf16.gmra.mrb[0].mxu0 %v163
    %v416 = vpop.f32.mrb[0].mxu0
    %v417 = vadd.f32 %v352, %v416
    %v418 = vpop.f32.mrb[0].mxu0
    %v419 = vpop.f32.mrb[0].mxu0
    %v420 = vadd.f32 %v355, %v419
    %v421 = vpop.f32.mrb[0].mxu0
    %422 = vmatprep.mubr.bf16.mxu0 0
    %423 = vmatmul.mubr.bf16.gmra.mrb[0].mxu0 %v166
    %v424 = vpop.f32.mrb[0].mxu0
    %v425 = vadd.f32 %v360, %v424
    %v426 = vpop.f32.mrb[0].mxu0
    %v427 = vpop.f32.mrb[0].mxu0
    %v428 = vadd.f32 %v363, %v427
    %v429 = vpop.f32.mrb[0].mxu0
    %430 = vdwg.mxu0
    %vm431 = vcmask 80896
    %432 = vst.msk [vmem:[%s3] sm:$0xff] %vm431, %v401
    %433 = vst.msk [vmem:[%s3 + $0x8] sm:$0xff] %vm431, %v404
    %434 = vst.msk [vmem:[%s3 + $0x10] sm:$0xff] %vm431, %v409
    %435 = vst.msk [vmem:[%s3 + $0x18] sm:$0xff] %vm431, %v412
    %436 = vst.msk [vmem:[%s3 + $0x20] sm:$0xff] %vm431, %v417
    %437 = vst.msk [vmem:[%s3 + $0x28] sm:$0xff] %vm431, %v420
    %438 = vst.msk [vmem:[%s3 + $0x30] sm:$0xff] %vm431, %v425
    %439 = vst.msk [vmem:[%s3 + $0x38] sm:$0xff] %vm431, %v428
    // Predicated region
    $region22: #{mnist_logistic_forward.1} parent=1 // pred_check
      _
    $region23: #{mnist_logistic_forward.1} parent=1 // pred_check_branch
      %441 = sbr.rel (0) target = $region25
    $region24: #{mnist_logistic_forward.1} parent=1 // pred_region
      _
    $region25: #{mnist_logistic_forward.1} parent=1 // pred_fallthru
      _
    // Predicated region
    $region26: #{mnist_logistic_forward.1} parent=1 // pred_check
      _
    $region27: #{mnist_logistic_forward.1} parent=1 // pred_check_branch
      %443 = sbr.rel (0) target = $region29
    $region28: #{mnist_logistic_forward.1} parent=1 // pred_region
      _
    $region29: #{mnist_logistic_forward.1} parent=1 // pred_fallthru
      _
    %444 = vsyncpa [#allocation3], 1
    %445 = vsyncpa [#allocation5], 1

</llo_original>
